<compile_context>
chip_gen: v7x
topology: tpu7x:2x2x1
jax: 0.10.0
libtpu: 0.0.40
codegen_flags: <defaults>
</compile_context>

<pallas_src>
import functools

import jax
import jax.numpy as jnp
from jax import lax
from jax.experimental import pallas as pl
from jax.experimental.pallas import tpu as pltpu

_BN_EPS = 1e-5
_VMEM_LIMIT_BYTES = 48 * 1024 * 1024


def _round_up(x, m):
    return (x + m - 1) // m * m


def _resident_spec(block_shape, index_map):
    """BlockSpec for a grid-invariant operand (constant index_map -> never re-DMA'd).

    Requests single buffering so Pallas does not waste VMEM on a useless second
    buffer.  Falls back to the default (double-buffered) spec on JAX versions
    without the pipeline_mode kwarg.
    """
    if hasattr(pl, "Buffered"):
        try:
            return pl.BlockSpec(block_shape, index_map, pipeline_mode=pl.Buffered(1))
        except TypeError:
            pass
    return pl.BlockSpec(block_shape, index_map)


def _default_block_n():
    # v7x: 2 TensorCores + 64 MiB VMEM -> 256-row tiles keep >=4 grid steps per core
    # for DMA/compute overlap without crowding VMEM.
    # v5e / v6e: single TensorCore (grid is a serial loop) -> 512-row tiles halve the
    # per-step pipeline overhead and issue larger, roofline-friendlier DMAs.
    try:
        kind = jax.devices()[0].device_kind.lower()
    except Exception:
        return 256
    if "v7" in kind or "7x" in kind:
        return 256
    return 512


# ---------------- phase 1: layer1 GEMM + per-tile partial BN statistics ----------------
def _layer1_stats_kernel(x_ref, w1t_ref, h_ref, sum_ref, sumsq_ref):
    # bf16 MXU operands, f32 accumulation.
    x = x_ref[...].astype(w1t_ref.dtype)
    h = jnp.dot(x, w1t_ref[...], preferred_element_type=jnp.float32)
    # NOTE: layer1's bias is intentionally omitted — under training-mode BatchNorm it
    # cancels exactly ((h + b1) - mean(h + b1) == h - mean(h)).
    # Per-tile partial statistics (one pass: sum + sum of squares), taken from the f32
    # accumulator BEFORE the bf16 store so the BN statistics stay exact.  Kept on
    # VPU/XLU (free slots next to the MXU) — do NOT turn these into ones-matmuls.
    sum_ref[...] = jnp.sum(h, axis=0, keepdims=True)[None]
    sumsq_ref[...] = jnp.sum(h * h, axis=0, keepdims=True)[None]
    # h round-trips HBM between the phases -> store it in bf16 to halve that traffic.
    h_ref[...] = h.astype(h_ref.dtype)


# -------- phase 2: in-kernel BN finalize + BN affine + ReLU + layer2 GEMM --------
def _bn_relu_layer2_kernel(h_ref, psum_ref, psumsq_ref, gamma_ref, beta_ref,
                           w2t_ref, b2_ref, o_ref, *, inv_n):
    # BN stats finalization folded into this kernel: the (num_tiles, hidden) reduce and
    # the rsqrt are tiny VPU/EUP work that hides under the MXU matmul, and it removes
    # the inter-kernel XLA fusion / HBM hop for the scale/shift tensors.
    sum_h = jnp.sum(psum_ref[...], axis=0)          # (1, hidden)
    sumsq_h = jnp.sum(psumsq_ref[...], axis=0)      # (1, hidden)
    mean = sum_h * inv_n                            # true batch size folded in
    var = jnp.maximum(sumsq_h * inv_n - mean * mean, 0.0)   # biased variance
    scale = gamma_ref[...] * lax.rsqrt(var + _BN_EPS)        # gamma folded into rsqrt
    shift = beta_ref[...] - mean * scale
    # Upcast the bf16-stored activation to f32 BEFORE the affine.
    h = h_ref[...].astype(jnp.float32)
    r = jnp.maximum(h * scale + shift, 0.0)
    out = jnp.dot(r.astype(w2t_ref.dtype), w2t_ref[...],
                  preferred_element_type=jnp.float32)
    o_ref[...] = (out + b2_ref[...]).astype(o_ref.dtype)


def prepare_params(w1, b1, gamma, beta, w2, b2, matmul_dtype=jnp.bfloat16):
    """Done ONCE at parameter-load time (not per forward call).

    w1: (hidden, in_dim), w2: (out_dim, hidden) -- PyTorch nn.Linear layout.
    b1 is accepted for interface parity but dropped: it cancels exactly under
    training-mode BatchNorm (batch statistics).  If BN were ever run in eval mode
    with running statistics, b1 would have to be reinstated.
    """
    del b1
    return {
        "w1t": jnp.asarray(w1).T.astype(matmul_dtype),           # (in_dim, hidden)
        "w2t": jnp.asarray(w2).T.astype(matmul_dtype),           # (hidden, out_dim)
        "gamma": jnp.asarray(gamma).reshape(1, -1).astype(jnp.float32),
        "beta": jnp.asarray(beta).reshape(1, -1).astype(jnp.float32),
        "b2": jnp.asarray(b2).reshape(1, -1).astype(jnp.float32),
    }


def prediction_mlp_forward(x, params, *, block_n=None, out_dtype=None):
    """SimSiam prediction_MLP forward (training-mode BN, biased variance, eps=1e-5).

    x is consumed in its given dtype (bf16 accepted directly — no wrapper-side cast).
    Output dtype follows x.dtype unless out_dtype is given; the f32-accumulated result
    is truncated to that dtype on the final store.
    """
    x = jnp.asarray(x)
    n, in_dim = x.shape
    w1t, w2t = params["w1t"], params["w2t"]
    gamma, beta, b2 = params["gamma"], params["beta"], params["b2"]
    hidden = w1t.shape[1]
    out_dim = w2t.shape[1]
    out_dtype = x.dtype if out_dtype is None else jnp.dtype(out_dtype)

    if block_n is None:
        block_n = _default_block_n()
    # N-tile: multiple of 8 sublanes; tiles >= 256 are rounded to a multiple of 256 so
    # the MXU M dimension fills the 256-wide systolic arrays; clamp to the padded batch.
    block_n = max(8, _round_up(int(block_n), 8))
    if block_n >= 256:
        block_n = _round_up(block_n, 256)
    block_n = min(block_n, _round_up(n, 8))
    n_pad = _round_up(n, block_n)
    if n_pad != n:
        # Zero-padded rows contribute exactly zero to the BN statistics (layer1 has no
        # in-kernel bias), so dividing the sums by the true batch size n keeps the
        # statistics exact.  Padded output rows are sliced off at the end.
        x = jnp.pad(x, ((0, n_pad - n), (0, 0)))
    num_tiles = n_pad // block_n

    compiler_params = pltpu.CompilerParams(
        dimension_semantics=("parallel",),      # megacore shards the N axis on v7x
        vmem_limit_bytes=_VMEM_LIMIT_BYTES,
    )

    # ---- phase 1: h = x @ W1^T per tile (stored bf16) + per-tile partial BN stats ----
    h, psum, psumsq = pl.pallas_call(
        _layer1_stats_kernel,
        out_shape=(
            jax.ShapeDtypeStruct((n_pad, hidden), jnp.bfloat16),
            jax.ShapeDtypeStruct((num_tiles, 1, hidden), jnp.float32),
            jax.ShapeDtypeStruct((num_tiles, 1, hidden), jnp.float32),
        ),
        grid_spec=pltpu.PrefetchScalarGridSpec(
            num_scalar_prefetch=0,
            grid=(num_tiles,),
            in_specs=[
                pl.BlockSpec((block_n, in_dim), lambda i: (i, 0)),
                _resident_spec((in_dim, hidden), lambda i: (0, 0)),   # VMEM-resident
            ],
            out_specs=(
                pl.BlockSpec((block_n, hidden), lambda i: (i, 0)),
                pl.BlockSpec((1, 1, hidden), lambda i: (i, 0, 0)),
                pl.BlockSpec((1, 1, hidden), lambda i: (i, 0, 0)),
            ),
        ),
        compiler_params=compiler_params,
    )(x, w1t)

    # ---- phase 2: in-kernel BN finalize + BN affine + ReLU + layer2 GEMM per tile ----
    kernel2 = functools.partial(_bn_relu_layer2_kernel, inv_n=float(1.0 / n))
    out = pl.pallas_call(
        kernel2,
        out_shape=jax.ShapeDtypeStruct((n_pad, out_dim), out_dtype),
        grid_spec=pltpu.PrefetchScalarGridSpec(
            num_scalar_prefetch=0,
            grid=(num_tiles,),
            in_specs=[
                pl.BlockSpec((block_n, hidden), lambda i: (i, 0)),
                _resident_spec((num_tiles, 1, hidden), lambda i: (0, 0, 0)),
                _resident_spec((num_tiles, 1, hidden), lambda i: (0, 0, 0)),
                _resident_spec((1, hidden), lambda i: (0, 0)),
                _resident_spec((1, hidden), lambda i: (0, 0)),
                _resident_spec((hidden, out_dim), lambda i: (0, 0)),  # VMEM-resident
                _resident_spec((1, out_dim), lambda i: (0, 0)),
            ],
            out_specs=pl.BlockSpec((block_n, out_dim), lambda i: (i, 0)),
        ),
        compiler_params=compiler_params,
    )(h, psum, psumsq, gamma, beta, w2t, b2)

    return out[:n] if n_pad != n else out


if __name__ == "__main__":
    # Small shapes consistent with the module's bottleneck structure (real: 2048/512/2048).
    N, IN_DIM, HIDDEN_DIM, OUT_DIM = 32, 64, 32, 64

    key = jax.random.PRNGKey(0)
    kx, kw1, kb1, kg, kb, kw2, kb2 = jax.random.split(key, 7)

    x = jax.random.normal(kx, (N, IN_DIM), dtype=jnp.float32)

    # PyTorch nn.Linear layout: (out_features, in_features).
    w1 = jax.random.normal(kw1, (HIDDEN_DIM, IN_DIM), dtype=jnp.float32) * 0.05
    b1 = jax.random.normal(kb1, (HIDDEN_DIM,), dtype=jnp.float32) * 0.05
    # Non-trivial BN affine to exercise the gamma/beta path.
    gamma = 1.0 + 0.1 * jax.random.normal(kg, (HIDDEN_DIM,), dtype=jnp.float32)
    beta = 0.1 * jax.random.normal(kb, (HIDDEN_DIM,), dtype=jnp.float32)
    w2 = jax.random.normal(kw2, (OUT_DIM, HIDDEN_DIM), dtype=jnp.float32) * 0.05
    b2 = jax.random.normal(kb2, (OUT_DIM,), dtype=jnp.float32) * 0.05

    params = prepare_params(w1, b1, gamma, beta, w2, b2)
    forward = jax.jit(prediction_mlp_forward, static_argnames=("block_n", "out_dtype"))

    def reference(xr):
        # Pure-JAX f32 reference (training-mode BN, biased variance, eps=1e-5),
        # including the b1 bias that the kernel drops (it must cancel exactly).
        hh = xr @ w1.T + b1
        mean = hh.mean(axis=0, keepdims=True)
        var = ((hh - mean) ** 2).mean(axis=0, keepdims=True)
        hn = (hh - mean) / jnp.sqrt(var + _BN_EPS) * gamma + beta
        return jnp.maximum(hn, 0.0) @ w2.T + b2

    # Case 1: batch divisible by the N-tile (4 tiles of 8 rows).
    out = jax.block_until_ready(forward(x, params, block_n=8))
    assert out.shape == (N, OUT_DIM)
    # Tolerance accounts for bf16 MXU operands + bf16-stored h (f32 accumulation).
    assert jnp.allclose(out, reference(x), atol=3e-2, rtol=3e-2), "mismatch (case 1)"

    # Case 2: ragged batch (exercises the zero-padding path; BN stats stay exact).
    x2 = x[:28]
    out2 = jax.block_until_ready(forward(x2, params, block_n=8))
    assert out2.shape == (28, OUT_DIM)
    assert jnp.allclose(out2, reference(x2), atol=3e-2, rtol=3e-2), "mismatch (case 2)"

    # Case 3: default (per-generation) block_n -> single tile at this small batch.
    out3 = jax.block_until_ready(forward(x, params))
    assert out3.shape == (N, OUT_DIM)
    assert jnp.allclose(out3, reference(x), atol=3e-2, rtol=3e-2), "mismatch (case 3)"

    print("KERNEL_OK")
</pallas_src>

<mosaic_0001>
module attributes {stable_mosaic.version = 11 : i64} {
  func.func @_bn_relu_layer2_kernel(%arg0: i32, %arg1: memref<8x32xbf16, #tpu.memory_space<vmem>>, %arg2: memref<4x1x32xf32, #tpu.memory_space<vmem>>, %arg3: memref<4x1x32xf32, #tpu.memory_space<vmem>>, %arg4: memref<1x32xf32, #tpu.memory_space<vmem>>, %arg5: memref<1x32xf32, #tpu.memory_space<vmem>>, %arg6: memref<32x64xbf16, #tpu.memory_space<vmem>>, %arg7: memref<1x64xf32, #tpu.memory_space<vmem>>, %arg8: memref<8x64xf32, #tpu.memory_space<vmem>>) attributes {dimension_semantics = [#tpu.dimension_semantics<parallel>], iteration_bounds = array<i64: 4>, scalar_prefetch = 0 : i64, scratch_operands = 0 : i64, tpu.core_type = #tpu.core_type<tc>, window_params = [{transform_indices = @transform_0, window_bounds = array<i64: 8, 32>}, {pipeline_mode = #tpu.pipeline_mode<synchronous>, transform_indices = @transform_1, window_bounds = array<i64: 4, 1, 32>}, {pipeline_mode = #tpu.pipeline_mode<synchronous>, transform_indices = @transform_2, window_bounds = array<i64: 4, 1, 32>}, {pipeline_mode = #tpu.pipeline_mode<synchronous>, transform_indices = @transform_3, window_bounds = array<i64: 1, 32>}, {pipeline_mode = #tpu.pipeline_mode<synchronous>, transform_indices = @transform_4, window_bounds = array<i64: 1, 32>}, {pipeline_mode = #tpu.pipeline_mode<synchronous>, transform_indices = @transform_5, window_bounds = array<i64: 32, 64>}, {pipeline_mode = #tpu.pipeline_mode<synchronous>, transform_indices = @transform_6, window_bounds = array<i64: 1, 64>}, {transform_indices = @transform_7, window_bounds = array<i64: 8, 64>}]} {
    %c0 = arith.constant 0 : index
    %c0_0 = arith.constant 0 : index
    %c0_1 = arith.constant 0 : index
    %0 = vector.load %arg2[%c0, %c0_0, %c0_1] : memref<4x1x32xf32, #tpu.memory_space<vmem>>, vector<4x1x32xf32>
    %cst = arith.constant dense<0.000000e+00> : vector<1x32xf32>
    %1 = vector.multi_reduction <add>, %0, %cst [0] : vector<4x1x32xf32> to vector<1x32xf32>
    %c0_2 = arith.constant 0 : index
    %c0_3 = arith.constant 0 : index
    %c0_4 = arith.constant 0 : index
    %2 = vector.load %arg3[%c0_2, %c0_3, %c0_4] : memref<4x1x32xf32, #tpu.memory_space<vmem>>, vector<4x1x32xf32>
    %cst_5 = arith.constant dense<0.000000e+00> : vector<1x32xf32>
    %3 = vector.multi_reduction <add>, %2, %cst_5 [0] : vector<4x1x32xf32> to vector<1x32xf32>
    %cst_6 = arith.constant 3.125000e-02 : f32
    %4 = vector.broadcast %cst_6 : f32 to vector<1x32xf32>
    %5 = arith.mulf %1, %4 : vector<1x32xf32>
    %cst_7 = arith.constant 3.125000e-02 : f32
    %6 = vector.broadcast %cst_7 : f32 to vector<1x32xf32>
    %7 = arith.mulf %3, %6 : vector<1x32xf32>
    %8 = arith.mulf %5, %5 : vector<1x32xf32>
    %9 = arith.subf %7, %8 : vector<1x32xf32>
    %cst_8 = arith.constant 0.000000e+00 : f32
    %10 = vector.broadcast %cst_8 : f32 to vector<1x32xf32>
    %11 = arith.maximumf %9, %10 : vector<1x32xf32>
    %c0_9 = arith.constant 0 : index
    %c0_10 = arith.constant 0 : index
    %12 = vector.load %arg4[%c0_9, %c0_10] : memref<1x32xf32, #tpu.memory_space<vmem>>, vector<1x32xf32>
    %cst_11 = arith.constant 9.99999974E-6 : f32
    %13 = vector.broadcast %cst_11 : f32 to vector<1x32xf32>
    %14 = arith.addf %11, %13 : vector<1x32xf32>
    %15 = math.rsqrt %14 : vector<1x32xf32>
    %16 = arith.mulf %12, %15 : vector<1x32xf32>
    %c0_12 = arith.constant 0 : index
    %c0_13 = arith.constant 0 : index
    %17 = vector.load %arg5[%c0_12, %c0_13] : memref<1x32xf32, #tpu.memory_space<vmem>>, vector<1x32xf32>
    %18 = arith.mulf %5, %16 : vector<1x32xf32>
    %19 = arith.subf %17, %18 : vector<1x32xf32>
    %c0_14 = arith.constant 0 : index
    %c0_15 = arith.constant 0 : index
    %20 = vector.load %arg1[%c0_14, %c0_15] : memref<8x32xbf16, #tpu.memory_space<vmem>>, vector<8x32xbf16>
    %21 = arith.extf %20 : vector<8x32xbf16> to vector<8x32xf32>
    %22 = vector.broadcast %16 : vector<1x32xf32> to vector<8x32xf32>
    %23 = arith.mulf %21, %22 : vector<8x32xf32>
    %24 = vector.broadcast %19 : vector<1x32xf32> to vector<8x32xf32>
    %25 = arith.addf %23, %24 : vector<8x32xf32>
    %cst_16 = arith.constant 0.000000e+00 : f32
    %26 = vector.broadcast %cst_16 : f32 to vector<8x32xf32>
    %27 = arith.maximumf %25, %26 : vector<8x32xf32>
    %28 = arith.truncf %27 : vector<8x32xf32> to vector<8x32xbf16>
    %c0_17 = arith.constant 0 : index
    %c0_18 = arith.constant 0 : index
    %29 = vector.load %arg6[%c0_17, %c0_18] : memref<32x64xbf16, #tpu.memory_space<vmem>>, vector<32x64xbf16>
    %cst_19 = arith.constant dense<0.000000e+00> : vector<8x64xf32>
    %30 = tpu.matmul %28, %29, %cst_19 {dimension_numbers = #tpu.dot_dimension_numbers<[1], [0], [0], [1], [0, 0, 1, 1], [], []>} : vector<8x32xbf16>, vector<32x64xbf16>, vector<8x64xf32> -> vector<8x64xf32>
    %c0_20 = arith.constant 0 : index
    %c0_21 = arith.constant 0 : index
    %31 = vector.load %arg7[%c0_20, %c0_21] : memref<1x64xf32, #tpu.memory_space<vmem>>, vector<1x64xf32>
    %32 = vector.broadcast %31 : vector<1x64xf32> to vector<8x64xf32>
    %33 = arith.addf %30, %32 : vector<8x64xf32>
    %c0_22 = arith.constant 0 : index
    %c0_23 = arith.constant 0 : index
    %34 = vector.load %arg8[%c0_22, %c0_23] : memref<8x64xf32, #tpu.memory_space<vmem>>, vector<8x64xf32>
    tpu.vector_store %arg8[%c0_22, %c0_23], %33 {strides = array<i32>} : memref<8x64xf32, #tpu.memory_space<vmem>>, vector<8x64xf32>,
    return
  }
  func.func @transform_0(%arg0: i32) -> (i32, i32) {
    %c0_i32 = arith.constant 0 : i32
    %c0_i32_0 = arith.constant 0 : i32
    return %arg0, %c0_i32 : i32, i32
  }
  func.func @transform_1(%arg0: i32) -> (i32, i32, i32) {
    %c0_i32 = arith.constant 0 : i32
    %c0_i32_0 = arith.constant 0 : i32
    %c0_i32_1 = arith.constant 0 : i32
    %c0_i32_2 = arith.constant 0 : i32
    return %c0_i32, %c0_i32_0, %c0_i32_1 : i32, i32, i32
  }
  func.func @transform_2(%arg0: i32) -> (i32, i32, i32) {
    %c0_i32 = arith.constant 0 : i32
    %c0_i32_0 = arith.constant 0 : i32
    %c0_i32_1 = arith.constant 0 : i32
    %c0_i32_2 = arith.constant 0 : i32
    return %c0_i32, %c0_i32_0, %c0_i32_1 : i32, i32, i32
  }
  func.func @transform_3(%arg0: i32) -> (i32, i32) {
    %c0_i32 = arith.constant 0 : i32
    %c0_i32_0 = arith.constant 0 : i32
    %c0_i32_1 = arith.constant 0 : i32
    return %c0_i32, %c0_i32_0 : i32, i32
  }
  func.func @transform_4(%arg0: i32) -> (i32, i32) {
    %c0_i32 = arith.constant 0 : i32
    %c0_i32_0 = arith.constant 0 : i32
    %c0_i32_1 = arith.constant 0 : i32
    return %c0_i32, %c0_i32_0 : i32, i32
  }
  func.func @transform_5(%arg0: i32) -> (i32, i32) {
    %c0_i32 = arith.constant 0 : i32
    %c0_i32_0 = arith.constant 0 : i32
    %c0_i32_1 = arith.constant 0 : i32
    return %c0_i32, %c0_i32_0 : i32, i32
  }
  func.func @transform_6(%arg0: i32) -> (i32, i32) {
    %c0_i32 = arith.constant 0 : i32
    %c0_i32_0 = arith.constant 0 : i32
    %c0_i32_1 = arith.constant 0 : i32
    return %c0_i32, %c0_i32_0 : i32, i32
  }
  func.func @transform_7(%arg0: i32) -> (i32, i32) {
    %c0_i32 = arith.constant 0 : i32
    %c0_i32_0 = arith.constant 0 : i32
    return %arg0, %c0_i32 : i32, i32
  }
}

module attributes {stable_mosaic.version = 11 : i64} {
  func.func @_layer1_stats_kernel(%arg0: i32, %arg1: memref<8x64xf32, #tpu.memory_space<vmem>>, %arg2: memref<64x32xbf16, #tpu.memory_space<vmem>>, %arg3: memref<8x32xbf16, #tpu.memory_space<vmem>>, %arg4: memref<1x1x32xf32, #tpu.memory_space<vmem>>, %arg5: memref<1x1x32xf32, #tpu.memory_space<vmem>>) attributes {dimension_semantics = [#tpu.dimension_semantics<parallel>], iteration_bounds = array<i64: 4>, scalar_prefetch = 0 : i64, scratch_operands = 0 : i64, tpu.core_type = #tpu.core_type<tc>, window_params = [{transform_indices = @transform_0, window_bounds = array<i64: 8, 64>}, {pipeline_mode = #tpu.pipeline_mode<synchronous>, transform_indices = @transform_1, window_bounds = array<i64: 64, 32>}, {transform_indices = @transform_2, window_bounds = array<i64: 8, 32>}, {transform_indices = @transform_3, window_bounds = array<i64: 1, 1, 32>}, {transform_indices = @transform_4, window_bounds = array<i64: 1, 1, 32>}]} {
    %c0 = arith.constant 0 : index
    %c0_0 = arith.constant 0 : index
    %0 = vector.load %arg1[%c0, %c0_0] : memref<8x64xf32, #tpu.memory_space<vmem>>, vector<8x64xf32>
    %1 = arith.truncf %0 : vector<8x64xf32> to vector<8x64xbf16>
    %c0_1 = arith.constant 0 : index
    %c0_2 = arith.constant 0 : index
    %2 = vector.load %arg2[%c0_1, %c0_2] : memref<64x32xbf16, #tpu.memory_space<vmem>>, vector<64x32xbf16>
    %cst = arith.constant dense<0.000000e+00> : vector<8x32xf32>
    %3 = tpu.matmul %1, %2, %cst {dimension_numbers = #tpu.dot_dimension_numbers<[1], [0], [0], [1], [0, 0, 1, 1], [], []>} : vector<8x64xbf16>, vector<64x32xbf16>, vector<8x32xf32> -> vector<8x32xf32>
    %cst_3 = arith.constant dense<0.000000e+00> : vector<32xf32>
    %4 = vector.multi_reduction <add>, %3, %cst_3 [0] : vector<8x32xf32> to vector<32xf32>
    %5 = vector.shape_cast %4 : vector<32xf32> to vector<1x32xf32>
    %6 = vector.shape_cast %5 : vector<1x32xf32> to vector<1x1x32xf32>
    %c0_4 = arith.constant 0 : index
    %c0_5 = arith.constant 0 : index
    %c0_6 = arith.constant 0 : index
    %7 = vector.load %arg4[%c0_4, %c0_5, %c0_6] : memref<1x1x32xf32, #tpu.memory_space<vmem>>, vector<1x1x32xf32>
    tpu.vector_store %arg4[%c0_4, %c0_5, %c0_6], %6 {strides = array<i32>} : memref<1x1x32xf32, #tpu.memory_space<vmem>>, vector<1x1x32xf32>,
    %8 = arith.mulf %3, %3 : vector<8x32xf32>
    %cst_7 = arith.constant dense<0.000000e+00> : vector<32xf32>
    %9 = vector.multi_reduction <add>, %8, %cst_7 [0] : vector<8x32xf32> to vector<32xf32>
    %10 = vector.shape_cast %9 : vector<32xf32> to vector<1x32xf32>
    %11 = vector.shape_cast %10 : vector<1x32xf32> to vector<1x1x32xf32>
    %c0_8 = arith.constant 0 : index
    %c0_9 = arith.constant 0 : index
    %c0_10 = arith.constant 0 : index
    %12 = vector.load %arg5[%c0_8, %c0_9, %c0_10] : memref<1x1x32xf32, #tpu.memory_space<vmem>>, vector<1x1x32xf32>
    tpu.vector_store %arg5[%c0_8, %c0_9, %c0_10], %11 {strides = array<i32>} : memref<1x1x32xf32, #tpu.memory_space<vmem>>, vector<1x1x32xf32>,
    %13 = arith.truncf %3 : vector<8x32xf32> to vector<8x32xbf16>
    %c0_11 = arith.constant 0 : index
    %c0_12 = arith.constant 0 : index
    %14 = vector.load %arg3[%c0_11, %c0_12] : memref<8x32xbf16, #tpu.memory_space<vmem>>, vector<8x32xbf16>
    tpu.vector_store %arg3[%c0_11, %c0_12], %13 {strides = array<i32>} : memref<8x32xbf16, #tpu.memory_space<vmem>>, vector<8x32xbf16>,
    return
  }
  func.func @transform_0(%arg0: i32) -> (i32, i32) {
    %c0_i32 = arith.constant 0 : i32
    %c0_i32_0 = arith.constant 0 : i32
    return %arg0, %c0_i32 : i32, i32
  }
  func.func @transform_1(%arg0: i32) -> (i32, i32) {
    %c0_i32 = arith.constant 0 : i32
    %c0_i32_0 = arith.constant 0 : i32
    %c0_i32_1 = arith.constant 0 : i32
    return %c0_i32, %c0_i32_0 : i32, i32
  }
  func.func @transform_2(%arg0: i32) -> (i32, i32) {
    %c0_i32 = arith.constant 0 : i32
    %c0_i32_0 = arith.constant 0 : i32
    return %arg0, %c0_i32 : i32, i32
  }
  func.func @transform_3(%arg0: i32) -> (i32, i32, i32) {
    %c0_i32 = arith.constant 0 : i32
    %c0_i32_0 = arith.constant 0 : i32
    %c0_i32_1 = arith.constant 0 : i32
    return %arg0, %c0_i32, %c0_i32_0 : i32, i32, i32
  }
  func.func @transform_4(%arg0: i32) -> (i32, i32, i32) {
    %c0_i32 = arith.constant 0 : i32
    %c0_i32_0 = arith.constant 0 : i32
    %c0_i32_1 = arith.constant 0 : i32
    return %arg0, %c0_i32, %c0_i32_0 : i32, i32, i32
  }
}

</mosaic_0001>

<llo_original>
// kernel: prediction_mlp_forward.3
$region0: #{prediction_mlp_forward.3}
  #allocation0 [shape = 'u32[]', space=smem, size = 0x4, offset = 0x4, fixed_abs, tag = 'smem constant byte address 0x4 - core index']
  #allocation1 [shape = 'u32[144,128]{1,0:T(1,128)}', space=vmem, size = 0x12000, scoped, tag = 'internal scratch']
  %s0 = inlined_call_operand.vmem [shape: bf16[32,32], index: 0, kind: input, shape index: {}]
  %s1 = inlined_call_operand.vmem [shape: f32[4,1,32], index: 1, kind: input, shape index: {}]
  %s2 = inlined_call_operand.vmem [shape: f32[4,1,32], index: 2, kind: input, shape index: {}]
  %s3 = inlined_call_operand.vmem [shape: f32[1,32], index: 3, kind: input, shape index: {}]
  %s4 = inlined_call_operand.vmem [shape: f32[1,32], index: 4, kind: input, shape index: {}]
  %s5 = inlined_call_operand.vmem [shape: bf16[32,64], index: 5, kind: input, shape index: {}]
  %s6 = inlined_call_operand.vmem [shape: f32[1,64], index: 6, kind: input, shape index: {}]
  %s7 = inlined_call_operand.hbm [shape: f32[32,64], index: 7, kind: output, shape index: {}]
  %s8 = sld [smem:[#allocation0]]
  $region61: #{prediction_mlp_forward.3} parent=0
    _
  %s10 = ssub.s32 1, %s8
  %s11 = scalar_select 0, %s10, %s8
  $region1: #{prediction_mlp_forward.3} parent=0
    #allocation2 [shape = 'u8[8192]{0}', space=vmem, size = 0x2000, scoped, tag = 'output window, operand 0']
    #allocation3 [shape = 's32[2]{0}', space=sflag, size = 0x8, scoped, tag = 'scoped memory for prediction_mlp_forward.3']
    %12 = vsyncpa [#allocation3], 0
    %s13 = scalar_lea.sflag [#allocation3], 1
    %14 = vsyncpa %s13, 0
    loop: start=0, step=1, limit=6
    $region2: #{prediction_mlp_forward.3} parent=1 // loop_pre_header
      _
    $region3: #{prediction_mlp_forward.3} parent=1 // loop_header
      %s16 = sphi 0, %s20
      %p17 = scmp.ge.s32.totalorder %s16, 6
      %s26 = sphi 0, %s28
      %s29 = sphi 0, %s26
      %s30 = sphi 0, %s29
      %s46 = sphi 0, %s30
      %s50 = sphi 0, %s50
      %s52 = sphi 0, %s50
      %s53 = sphi 0, %s52
      %s67 = sphi 0, %s53
      %s71 = sphi 0, %s71
      %s73 = sphi 0, %s71
      %s74 = sphi 0, %s73
      %s88 = sphi 0, %s74
      %s92 = sphi 0, %s92
      %s94 = sphi 0, %s92
      %s95 = sphi 0, %s94
      %s109 = sphi 0, %s95
      %s113 = sphi 0, %s113
      %s115 = sphi 0, %s113
      %s116 = sphi 0, %s115
      %s130 = sphi 0, %s116
      %s134 = sphi 0, %s134
      %s136 = sphi 0, %s134
      %s137 = sphi 0, %s136
      %s151 = sphi 0, %s137
      %s155 = sphi 0, %s155
      %s157 = sphi 0, %s155
      %s158 = sphi 0, %s157
      %s172 = sphi 0, %s158
      %s178 = sphi 0, %s180
      %s181 = sphi 0, %s178
      %s182 = sphi 0, %s181
      %s198 = sphi 0, %s182
    $region4: #{prediction_mlp_forward.3} parent=1 // loop_header_branch
      %19 = sbr.rel (%p17) target = $region8
    $region5: #{prediction_mlp_forward.3} parent=1 // loop_body
      %s21 = ssub.s32 %s16, 1
      %s22 = ssub.s32 %s16, 2
      %s23 = sadd.s32 %s16, 1
      %s24 = ssub.s32 %s16, %s23
      %p25 = scmp.eq.s32.totalorder %s24, 0
      %s27 = sadd.s32 %s26, 1
      %s28 = scalar_select %p25, %s26, %s27
      %p31 = pneg %p25
      %p32 = scmp.eq.s32.totalorder %s16, 3
      %p33 = por %p31, %p32
      %p34 = scmp.ne.s32.totalorder %s26, %s29
      %p35 = scmp.eq.s32.totalorder %s16, 0
      %p36 = por %p34, %p35
      %p37 = scmp.ne.s32.totalorder %s26, %s29
      %p38 = scmp.eq.s32.totalorder %s21, 3
      %p39 = por %p37, %p38
      %p40 = scmp.ne.s32.totalorder %s29, %s30
      %p41 = scmp.eq.s32.totalorder %s21, 0
      %p42 = por %p40, %p41
      %p43 = scmp.ne.s32.totalorder %s29, %s30
      %p44 = scmp.eq.s32.totalorder %s22, 3
      %p45 = por %p43, %p44
      %p47 = scmp.ne.s32.totalorder %s30, %s46
      %p48 = scmp.eq.s32.totalorder %s22, 0
      %p49 = por %p47, %p48
      %s51 = sadd.s32 %s50, 1
      %p54 = scmp.eq.s32.totalorder %s16, 3
      %p55 = scmp.ne.s32.totalorder %s50, %s52
      %p56 = scmp.eq.s32.totalorder %s16, 0
      %p57 = por %p55, %p56
      %p58 = scmp.ne.s32.totalorder %s50, %s52
      %p59 = scmp.eq.s32.totalorder %s21, 3
      %p60 = por %p58, %p59
      %p61 = scmp.ne.s32.totalorder %s52, %s53
      %p62 = scmp.eq.s32.totalorder %s21, 0
      %p63 = por %p61, %p62
      %p64 = scmp.ne.s32.totalorder %s52, %s53
      %p65 = scmp.eq.s32.totalorder %s22, 3
      %p66 = por %p64, %p65
      %p68 = scmp.ne.s32.totalorder %s53, %s67
      %p69 = scmp.eq.s32.totalorder %s22, 0
      %p70 = por %p68, %p69
      %s72 = sadd.s32 %s71, 1
      %p75 = scmp.eq.s32.totalorder %s16, 3
      %p76 = scmp.ne.s32.totalorder %s71, %s73
      %p77 = scmp.eq.s32.totalorder %s16, 0
      %p78 = por %p76, %p77
      %p79 = scmp.ne.s32.totalorder %s71, %s73
      %p80 = scmp.eq.s32.totalorder %s21, 3
      %p81 = por %p79, %p80
      %p82 = scmp.ne.s32.totalorder %s73, %s74
      %p83 = scmp.eq.s32.totalorder %s21, 0
      %p84 = por %p82, %p83
      %p85 = scmp.ne.s32.totalorder %s73, %s74
      %p86 = scmp.eq.s32.totalorder %s22, 3
      %p87 = por %p85, %p86
      %p89 = scmp.ne.s32.totalorder %s74, %s88
      %p90 = scmp.eq.s32.totalorder %s22, 0
      %p91 = por %p89, %p90
      %s93 = sadd.s32 %s92, 1
      %p96 = scmp.eq.s32.totalorder %s16, 3
      %p97 = scmp.ne.s32.totalorder %s92, %s94
      %p98 = scmp.eq.s32.totalorder %s16, 0
      %p99 = por %p97, %p98
      %p100 = scmp.ne.s32.totalorder %s92, %s94
      %p101 = scmp.eq.s32.totalorder %s21, 3
      %p102 = por %p100, %p101
      %p103 = scmp.ne.s32.totalorder %s94, %s95
      %p104 = scmp.eq.s32.totalorder %s21, 0
      %p105 = por %p103, %p104
      %p106 = scmp.ne.s32.totalorder %s94, %s95
      %p107 = scmp.eq.s32.totalorder %s22, 3
      %p108 = por %p106, %p107
      %p110 = scmp.ne.s32.totalorder %s95, %s109
      %p111 = scmp.eq.s32.totalorder %s22, 0
      %p112 = por %p110, %p111
      %s114 = sadd.s32 %s113, 1
      %p117 = scmp.eq.s32.totalorder %s16, 3
      %p118 = scmp.ne.s32.totalorder %s113, %s115
      %p119 = scmp.eq.s32.totalorder %s16, 0
      %p120 = por %p118, %p119
      %p121 = scmp.ne.s32.totalorder %s113, %s115
      %p122 = scmp.eq.s32.totalorder %s21, 3
      %p123 = por %p121, %p122
      %p124 = scmp.ne.s32.totalorder %s115, %s116
      %p125 = scmp.eq.s32.totalorder %s21, 0
      %p126 = por %p124, %p125
      %p127 = scmp.ne.s32.totalorder %s115, %s116
      %p128 = scmp.eq.s32.totalorder %s22, 3
      %p129 = por %p127, %p128
      %p131 = scmp.ne.s32.totalorder %s116, %s130
      %p132 = scmp.eq.s32.totalorder %s22, 0
      %p133 = por %p131, %p132
      %s135 = sadd.s32 %s134, 1
      %p138 = scmp.eq.s32.totalorder %s16, 3
      %p139 = scmp.ne.s32.totalorder %s134, %s136
      %p140 = scmp.eq.s32.totalorder %s16, 0
      %p141 = por %p139, %p140
      %p142 = scmp.ne.s32.totalorder %s134, %s136
      %p143 = scmp.eq.s32.totalorder %s21, 3
      %p144 = por %p142, %p143
      %p145 = scmp.ne.s32.totalorder %s136, %s137
      %p146 = scmp.eq.s32.totalorder %s21, 0
      %p147 = por %p145, %p146
      %p148 = scmp.ne.s32.totalorder %s136, %s137
      %p149 = scmp.eq.s32.totalorder %s22, 3
      %p150 = por %p148, %p149
      %p152 = scmp.ne.s32.totalorder %s137, %s151
      %p153 = scmp.eq.s32.totalorder %s22, 0
      %p154 = por %p152, %p153
      %s156 = sadd.s32 %s155, 1
      %p159 = scmp.eq.s32.totalorder %s16, 3
      %p160 = scmp.ne.s32.totalorder %s155, %s157
      %p161 = scmp.eq.s32.totalorder %s16, 0
      %p162 = por %p160, %p161
      %p163 = scmp.ne.s32.totalorder %s155, %s157
      %p164 = scmp.eq.s32.totalorder %s21, 3
      %p165 = por %p163, %p164
      %p166 = scmp.ne.s32.totalorder %s157, %s158
      %p167 = scmp.eq.s32.totalorder %s21, 0
      %p168 = por %p166, %p167
      %p169 = scmp.ne.s32.totalorder %s157, %s158
      %p170 = scmp.eq.s32.totalorder %s22, 3
      %p171 = por %p169, %p170
      %p173 = scmp.ne.s32.totalorder %s158, %s172
      %p174 = scmp.eq.s32.totalorder %s22, 0
      %p175 = por %p173, %p174
      %s176 = ssub.s32 %s16, %s23
      %p177 = scmp.eq.s32.totalorder %s176, 0
      %s179 = sadd.s32 %s178, 1
      %s180 = scalar_select %p177, %s178, %s179
      %p183 = pneg %p177
      %p184 = scmp.eq.s32.totalorder %s16, 3
      %p185 = por %p183, %p184
      %p186 = scmp.ne.s32.totalorder %s178, %s181
      %p187 = scmp.eq.s32.totalorder %s16, 0
      %p188 = por %p186, %p187
      %p189 = scmp.ne.s32.totalorder %s178, %s181
      %p190 = scmp.eq.s32.totalorder %s21, 3
      %p191 = por %p189, %p190
      %p192 = scmp.ne.s32.totalorder %s181, %s182
      %p193 = scmp.eq.s32.totalorder %s21, 0
      %p194 = por %p192, %p193
      %p195 = scmp.ne.s32.totalorder %s181, %s182
      %p196 = scmp.eq.s32.totalorder %s22, 3
      %p197 = por %p195, %p196
      %p199 = scmp.ne.s32.totalorder %s182, %s198
      %p200 = scmp.eq.s32.totalorder %s22, 0
      %p201 = por %p199, %p200
      %p202 = scmp.le.s32.totalorder 1, %s16
      %p203 = scmp.lt.s32.totalorder %s16, 5
      %p204 = pnand %p202, %p203
      %p205 = pneg %p204
      // Predicated region
      $region9: #{prediction_mlp_forward.3} parent=5 // pred_check
        _
      $region10: #{prediction_mlp_forward.3} parent=5 // pred_check_branch
        %207 = sbr.rel (%p204) target = $region12
      $region11: #{prediction_mlp_forward.3} parent=5 // pred_region
        %s208 = ssub.s32 %s16, 1
        // Predicated region
        $region13: #{prediction_mlp_forward.3} parent=11 // pred_check
          %p209 = pneg %p63
        $region14: #{prediction_mlp_forward.3} parent=11 // pred_check_branch
          %211 = sbr.rel (%p209) target = $region16
        $region15: #{prediction_mlp_forward.3} parent=11 // pred_region
          _
        $region16: #{prediction_mlp_forward.3} parent=11 // pred_fallthru
          _
        // Predicated region
        $region17: #{prediction_mlp_forward.3} parent=11 // pred_check
          %p212 = pneg %p84
        $region18: #{prediction_mlp_forward.3} parent=11 // pred_check_branch
          %214 = sbr.rel (%p212) target = $region20
        $region19: #{prediction_mlp_forward.3} parent=11 // pred_region
          _
        $region20: #{prediction_mlp_forward.3} parent=11 // pred_fallthru
          _
        // Predicated region
        $region21: #{prediction_mlp_forward.3} parent=11 // pred_check
          %p215 = pneg %p105
        $region22: #{prediction_mlp_forward.3} parent=11 // pred_check_branch
          %217 = sbr.rel (%p215) target = $region24
        $region23: #{prediction_mlp_forward.3} parent=11 // pred_region
          _
        $region24: #{prediction_mlp_forward.3} parent=11 // pred_fallthru
          _
        // Predicated region
        $region25: #{prediction_mlp_forward.3} parent=11 // pred_check
          %p218 = pneg %p126
        $region26: #{prediction_mlp_forward.3} parent=11 // pred_check_branch
          %220 = sbr.rel (%p218) target = $region28
        $region27: #{prediction_mlp_forward.3} parent=11 // pred_region
          _
        $region28: #{prediction_mlp_forward.3} parent=11 // pred_fallthru
          _
        // Predicated region
        $region29: #{prediction_mlp_forward.3} parent=11 // pred_check
          %p221 = pneg %p147
        $region30: #{prediction_mlp_forward.3} parent=11 // pred_check_branch
          %223 = sbr.rel (%p221) target = $region32
        $region31: #{prediction_mlp_forward.3} parent=11 // pred_region
          _
        $region32: #{prediction_mlp_forward.3} parent=11 // pred_fallthru
          _
        // Predicated region
        $region33: #{prediction_mlp_forward.3} parent=11 // pred_check
          %p224 = pneg %p168
        $region34: #{prediction_mlp_forward.3} parent=11 // pred_check_branch
          %226 = sbr.rel (%p224) target = $region36
        $region35: #{prediction_mlp_forward.3} parent=11 // pred_region
          _
        $region36: #{prediction_mlp_forward.3} parent=11 // pred_fallthru
          _
      $region12: #{prediction_mlp_forward.3} parent=5 // pred_fallthru
        _
      %p227 = scmp.lt.s32.totalorder %s16, 4
      // Predicated region
      $region37: #{prediction_mlp_forward.3} parent=5 // pred_check
        %p228 = pneg %p227
      $region38: #{prediction_mlp_forward.3} parent=5 // pred_check_branch
        %230 = sbr.rel (%p228) target = $region40
      $region39: #{prediction_mlp_forward.3} parent=5 // pred_region
        // Predicated region
        $region41: #{prediction_mlp_forward.3} parent=39 // pred_check
          %p231 = pneg %p36
        $region42: #{prediction_mlp_forward.3} parent=39 // pred_check_branch
          %233 = sbr.rel (%p231) target = $region44
        $region43: #{prediction_mlp_forward.3} parent=39 // pred_region
          %p234 = scmp.lt.s32.totalorder %s16, 3
          %s235 = scalar_select %p234, %s16, 3
          %s236 = smul.addr %s235, 4
          %s237 = scalar_lea.vmem %s0, %s236
        $region44: #{prediction_mlp_forward.3} parent=39 // pred_fallthru
          _
      $region40: #{prediction_mlp_forward.3} parent=5 // pred_fallthru
        _
      %p238 = scmp.le.s32.totalorder 1, %s16
      %p239 = scmp.lt.s32.totalorder %s16, 5
      %p240 = pnand %p238, %p239
      %p241 = pneg %p240
      // Predicated region
      $region45: #{prediction_mlp_forward.3} parent=5 // pred_check
        _
      $region46: #{prediction_mlp_forward.3} parent=5 // pred_check_branch
        %243 = sbr.rel (%p240) target = $region48
      $region47: #{prediction_mlp_forward.3} parent=5 // pred_region
        %s244 = ssub.s32 %s16, 1
        %p245 = scmp.lt.s32.totalorder %s21, 3
        %s246 = scalar_select %p245, %s21, 3
        %s247 = smul.addr %s246, 4
        %s248 = scalar_lea.vmem %s0, %s247
        %p249 = pneg %p42
        %p250 = pneg %p39
        %p251 = pneg %p63
        %p252 = pneg %p60
        %p253 = pneg %p84
        %p254 = pneg %p81
        %p255 = pneg %p105
        %p256 = pneg %p102
        %p257 = pneg %p126
        %p258 = pneg %p123
        %p259 = pneg %p147
        %p260 = pneg %p144
        %p261 = pneg %p168
        %p262 = pneg %p165
        %p263 = pneg %p194
        %p264 = pneg %p191
        %s265 = sand.u32 %s181, 1
        %s266 = scalar_lea.sflag [#allocation3], %s265
        %s267 = sand.u32 %s181, 1
        %s268 = smul.addr %s267, 8
        %s269 = scalar_lea.vmem [#allocation2], %s268
        %p270 = scmp.lt.s32.totalorder %s21, 3
        %s271 = scalar_select %p270, %s21, 3
        %s272 = smul.addr %s271, 4
        %s273 = scalar_lea.vmem %s0, %s272
        %v275 = vld [vmem:[%s1] sm:$0x1]
        %v276 = vld [vmem:[%s1 + $0x1] sm:$0x1]
        %v277 = vld [vmem:[%s1 + $0x2] sm:$0x1]
        %v278 = vld [vmem:[%s1 + $0x3] sm:$0x1]
        %vm279 = vcmask 253952
        %v280 = vsel %vm279, %v275, 0.0
        %v281 = vsel %vm279, %v276, 0.0
        %v282 = vadd.f32 %v280, %v281
        %v283 = vsel %vm279, %v277, 0.0
        %v284 = vadd.f32 %v282, %v283
        %v285 = vsel %vm279, %v278, 0.0
        %v286 = vadd.f32 %v284, %v285
        %v287 = vld [vmem:[%s2] sm:$0x1]
        %v288 = vld [vmem:[%s2 + $0x1] sm:$0x1]
        %v289 = vld [vmem:[%s2 + $0x2] sm:$0x1]
        %v290 = vld [vmem:[%s2 + $0x3] sm:$0x1]
        %v291 = vsel %vm279, %v287, 0.0
        %v292 = vsel %vm279, %v288, 0.0
        %v293 = vadd.f32 %v291, %v292
        %v294 = vsel %vm279, %v289, 0.0
        %v295 = vadd.f32 %v293, %v294
        %v296 = vsel %vm279, %v290, 0.0
        %v297 = vadd.f32 %v295, %v296
        %v298 = vmul.f32 %v286, 0.03125
        %v299 = vmul.f32 %v297, 0.03125
        %v300 = vmul.f32 %v298, %v298
        %v301 = vsub.f32 %v299, %v300
        %v302 = vmax.f32 %v301, 0.0
        %v303 = vld [vmem:[%s3] sm:$0x1]
        %v304 = vadd.f32 %v302, 1e-05
        %v305 = vrsqrt.pop %v304
        %v306 = vmul.f32 %v303, %v305
        %v307 = vld [vmem:[%s4] sm:$0x1]
        %v308 = vmul.f32 %v298, %v306
        %v309 = vsub.f32 %v307, %v308
        %v310 = vld [vmem:[%s273] sm:$0xf]
        %v311 = vunpack.c.l.bf16 %v310
        %v313 = vlaneseq
        %v314 = vshrl.u32 %v313, 7
        %v315 = vsub.s32 0, %v314
        %v316 = vrot.slane %v306, %v315
        %v318 = vmul.f32 %v311, %v316
        %v320 = vlaneseq
        %v321 = vshrl.u32 %v320, 7
        %v322 = vsub.s32 0, %v321
        %v323 = vrot.slane %v309, %v322
        %v325 = vadd.f32 %v318, %v323
        %v326 = vmax.f32 %v325, 0.0
        %v327 = vpack.c.bf16 %v326, %v326
        %v328 = vld [vmem:[%s5] sm:$0xf]
        %v329 = vld [vmem:[%s5 + $0x4] sm:$0xf]
        %v330 = vld [vmem:[%s5 + $0x8] sm:$0xf]
        %v331 = vld [vmem:[%s5 + $0xc] sm:$0xf]
        %v332 = vld [vmem:[%s6] sm:$0x1]
        %v334 = vlaneseq
        %v335 = vshrl.u32 %v334, 7
        %v336 = vsub.s32 0, %v335
        %v337 = vrot.slane %v332, %v336
        %v343 = vunpack.c.l.b16 %v328
        %v344 = vunpack.c.l.b16 %v329
        %v345 = vunpack.c.l.b16 %v330
        %v346 = vunpack.c.l.b16 %v331
        %v347 = vpack.c.b16 %v344, %v343
        %v348 = vpack.c.b16 %v346, %v345
        %vm351 = vcmask 261120
        %v353 = vsel %vm351, %v327, 0
        %355 = vmatprep.subr.bf16.mxu0 0
        %356 = vmatpush1.bf16.msra.mxu0 %v347
        %357 = vmatprep.subr.bf16.mxu0 0
        %358 = vmatpush1.bf16.msra.mxu0 %v348
        %359 = vmatprep.subr.bf16.mxu0 0
        %360 = vmatpush1.bf16.msra.mxu0 0
        %361 = vmatprep.subr.bf16.mxu0 0
        %362 = vmatpush1.bf16.msra.mxu0 0
        %363 = vmatprep.subr.bf16.mxu0 0
        %364 = vmatpush1.bf16.msra.mxu0 0
        %365 = vmatprep.subr.bf16.mxu0 0
        %366 = vmatpush1.bf16.msra.mxu0 0
        %367 = vmatprep.subr.bf16.mxu0 0
        %368 = vmatpush1.bf16.msra.mxu0 0
        %369 = vmatprep.subr.bf16.mxu0 0
        %370 = vmatpush1.bf16.msra.mxu0 0
        %371 = vmatprep.subr.bf16.mxu0 0
        %372 = vmatpush1.bf16.msra.mxu0 0
        %373 = vmatprep.subr.bf16.mxu0 0
        %374 = vmatpush1.bf16.msra.mxu0 0
        %375 = vmatprep.subr.bf16.mxu0 0
        %376 = vmatpush1.bf16.msra.mxu0 0
        %377 = vmatprep.subr.bf16.mxu0 0
        %378 = vmatpush1.bf16.msra.mxu0 0
        %379 = vmatprep.subr.bf16.mxu0 0
        %380 = vmatpush1.bf16.msra.mxu0 0
        %381 = vmatprep.subr.bf16.mxu0 0
        %382 = vmatpush1.bf16.msra.mxu0 0
        %383 = vmatprep.subr.bf16.mxu0 0
        %384 = vmatpush1.bf16.msra.mxu0 0
        %385 = vmatprep.subr.bf16.mxu0 0
        %386 = vmatpush1.bf16.msra.mxu0 0
        %387 = vmatprep.mubr.bf16.mxu0 0
        %388 = vmatmul.mubr.bf16.gmra.mrb[0].mxu0 %v353
        %v389 = vpop.f32.mrb[0].mxu0
        %v390 = vadd.f32 %v337, %v389
        %v391 = vpop.f32.mrb[0].mxu0
        %v392 = vpop.f32.mrb[0].mxu0
        %v393 = vpop.f32.mrb[0].mxu0
        %394 = vdwg.mxu0
        %vm395 = vcmask 523264
        %396 = vst.msk [vmem:[%s269] sm:$0xff] %vm395, %v390
        %s397 = sand.u32 %s181, 1
        %s398 = scalar_lea.sflag [#allocation3], %s397
        %s399 = sand.u32 %s181, 1
        %s400 = smul.addr %s399, 8
        %s401 = scalar_lea.vmem [#allocation2], %s400
        // Predicated region
        $region49: #{prediction_mlp_forward.3} parent=47 // pred_check
          %p402 = pneg %p191
        $region50: #{prediction_mlp_forward.3} parent=47 // pred_check_branch
          %404 = sbr.rel (%p402) target = $region52
        $region51: #{prediction_mlp_forward.3} parent=47 // pred_region
          %s406 = ssub.s32 128, 128
          %407 = vsyncadd %s398, %s406
          %s408 = smul.addr %s21, 128
          %s409 = scalar_lea.hbm %s7, %s408
          %s411 = sshll.u32 %s401, 4
          %s412 = int_to_ptr.vmem [resolvable:$true] %s411
          %414 = dma.vmem_to_hbm [thread:$0]  %s412, 128, %s409, %s398
        $region52: #{prediction_mlp_forward.3} parent=47 // pred_fallthru
          _
      $region48: #{prediction_mlp_forward.3} parent=5 // pred_fallthru
        _
      %p415 = scmp.le.s32.totalorder 2, %s16
      // Predicated region
      $region53: #{prediction_mlp_forward.3} parent=5 // pred_check
        %p416 = pneg %p415
      $region54: #{prediction_mlp_forward.3} parent=5 // pred_check_branch
        %418 = sbr.rel (%p416) target = $region56
      $region55: #{prediction_mlp_forward.3} parent=5 // pred_region
        %s419 = ssub.s32 %s16, 2
        // Predicated region
        $region57: #{prediction_mlp_forward.3} parent=55 // pred_check
          %p420 = pneg %p197
        $region58: #{prediction_mlp_forward.3} parent=55 // pred_check_branch
          %422 = sbr.rel (%p420) target = $region60
        $region59: #{prediction_mlp_forward.3} parent=55 // pred_region
          %s423 = sand.u32 %s182, 1
          %s424 = scalar_lea.sflag [#allocation3], %s423
          %s425 = sand.u32 %s182, 1
          %s426 = smul.addr %s425, 8
          %s427 = scalar_lea.vmem [#allocation2], %s426
          %428 = dma.done %s424, 128
        $region60: #{prediction_mlp_forward.3} parent=55 // pred_fallthru
          _
      $region56: #{prediction_mlp_forward.3} parent=5 // pred_fallthru
        _
    $region6: #{prediction_mlp_forward.3} parent=1 // loop_footer
      %s20 = sadd.s32 1, %s16
    $region7: #{prediction_mlp_forward.3} parent=1 // loop_footer_branch
      %15 = sbr.rel target = $region3
    $region8: #{prediction_mlp_forward.3} parent=1 // loop_exit
      _
    %429 = vsyncpa [#allocation3], 1
    %s430 = scalar_lea.sflag [#allocation3], 1
    %431 = vsyncpa %s430, 1

// kernel: prediction_mlp_forward.2
$region0: #{prediction_mlp_forward.2}
  #allocation0 [shape = 'u32[]', space=smem, size = 0x4, offset = 0x4, fixed_abs, tag = 'smem constant byte address 0x4 - core index']
  #allocation1 [shape = 'u32[144,128]{1,0:T(1,128)}', space=vmem, size = 0x12000, scoped, tag = 'internal scratch']
  %s0 = inlined_call_operand.vmem [shape: f32[32,64], index: 0, kind: input, shape index: {}]
  %s1 = inlined_call_operand.vmem [shape: bf16[64,32], index: 1, kind: input, shape index: {}]
  %s2 = inlined_call_operand.vmem [shape: bf16[32,32], index: 2, kind: output, shape index: {0}]
  %s3 = inlined_call_operand.vmem [shape: f32[4,1,32], index: 3, kind: output, shape index: {1}]
  %s4 = inlined_call_operand.vmem [shape: f32[4,1,32], index: 4, kind: output, shape index: {2}]
  %5 = xla_tuple %s2, %s3, %s4
  %s6 = sld [smem:[#allocation0]]
  $region57: #{prediction_mlp_forward.2} parent=0
    _
  %s8 = ssub.s32 1, %s6
  %s9 = scalar_select 0, %s8, %s6
  loop: start=0, step=1, limit=6
  $region2: #{prediction_mlp_forward.2} parent=0 // loop_pre_header
    _
  $region3: #{prediction_mlp_forward.2} parent=0 // loop_header
    %s11 = sphi 0, %s15
    %p12 = scmp.ge.s32.totalorder %s11, 6
    %s21 = sphi 0, %s23
    %s24 = sphi 0, %s21
    %s25 = sphi 0, %s24
    %s41 = sphi 0, %s25
    %s45 = sphi 0, %s45
    %s47 = sphi 0, %s45
    %s48 = sphi 0, %s47
    %s62 = sphi 0, %s48
    %s68 = sphi 0, %s70
    %s71 = sphi 0, %s68
    %s72 = sphi 0, %s71
    %s88 = sphi 0, %s72
    %s94 = sphi 0, %s96
    %s97 = sphi 0, %s94
    %s98 = sphi 0, %s97
    %s114 = sphi 0, %s98
    %s120 = sphi 0, %s122
    %s123 = sphi 0, %s120
    %s124 = sphi 0, %s123
    %s140 = sphi 0, %s124
  $region4: #{prediction_mlp_forward.2} parent=0 // loop_header_branch
    %14 = sbr.rel (%p12) target = $region8
  $region5: #{prediction_mlp_forward.2} parent=0 // loop_body
    %s16 = ssub.s32 %s11, 1
    %s17 = ssub.s32 %s11, 2
    %s18 = sadd.s32 %s11, 1
    %s19 = ssub.s32 %s11, %s18
    %p20 = scmp.eq.s32.totalorder %s19, 0
    %s22 = sadd.s32 %s21, 1
    %s23 = scalar_select %p20, %s21, %s22
    %p26 = pneg %p20
    %p27 = scmp.eq.s32.totalorder %s11, 3
    %p28 = por %p26, %p27
    %p29 = scmp.ne.s32.totalorder %s21, %s24
    %p30 = scmp.eq.s32.totalorder %s11, 0
    %p31 = por %p29, %p30
    %p32 = scmp.ne.s32.totalorder %s21, %s24
    %p33 = scmp.eq.s32.totalorder %s16, 3
    %p34 = por %p32, %p33
    %p35 = scmp.ne.s32.totalorder %s24, %s25
    %p36 = scmp.eq.s32.totalorder %s16, 0
    %p37 = por %p35, %p36
    %p38 = scmp.ne.s32.totalorder %s24, %s25
    %p39 = scmp.eq.s32.totalorder %s17, 3
    %p40 = por %p38, %p39
    %p42 = scmp.ne.s32.totalorder %s25, %s41
    %p43 = scmp.eq.s32.totalorder %s17, 0
    %p44 = por %p42, %p43
    %s46 = sadd.s32 %s45, 1
    %p49 = scmp.eq.s32.totalorder %s11, 3
    %p50 = scmp.ne.s32.totalorder %s45, %s47
    %p51 = scmp.eq.s32.totalorder %s11, 0
    %p52 = por %p50, %p51
    %p53 = scmp.ne.s32.totalorder %s45, %s47
    %p54 = scmp.eq.s32.totalorder %s16, 3
    %p55 = por %p53, %p54
    %p56 = scmp.ne.s32.totalorder %s47, %s48
    %p57 = scmp.eq.s32.totalorder %s16, 0
    %p58 = por %p56, %p57
    %p59 = scmp.ne.s32.totalorder %s47, %s48
    %p60 = scmp.eq.s32.totalorder %s17, 3
    %p61 = por %p59, %p60
    %p63 = scmp.ne.s32.totalorder %s48, %s62
    %p64 = scmp.eq.s32.totalorder %s17, 0
    %p65 = por %p63, %p64
    %s66 = ssub.s32 %s11, %s18
    %p67 = scmp.eq.s32.totalorder %s66, 0
    %s69 = sadd.s32 %s68, 1
    %s70 = scalar_select %p67, %s68, %s69
    %p73 = pneg %p67
    %p74 = scmp.eq.s32.totalorder %s11, 3
    %p75 = por %p73, %p74
    %p76 = scmp.ne.s32.totalorder %s68, %s71
    %p77 = scmp.eq.s32.totalorder %s11, 0
    %p78 = por %p76, %p77
    %p79 = scmp.ne.s32.totalorder %s68, %s71
    %p80 = scmp.eq.s32.totalorder %s16, 3
    %p81 = por %p79, %p80
    %p82 = scmp.ne.s32.totalorder %s71, %s72
    %p83 = scmp.eq.s32.totalorder %s16, 0
    %p84 = por %p82, %p83
    %p85 = scmp.ne.s32.totalorder %s71, %s72
    %p86 = scmp.eq.s32.totalorder %s17, 3
    %p87 = por %p85, %p86
    %p89 = scmp.ne.s32.totalorder %s72, %s88
    %p90 = scmp.eq.s32.totalorder %s17, 0
    %p91 = por %p89, %p90
    %s92 = ssub.s32 %s11, %s18
    %p93 = scmp.eq.s32.totalorder %s92, 0
    %s95 = sadd.s32 %s94, 1
    %s96 = scalar_select %p93, %s94, %s95
    %p99 = pneg %p93
    %p100 = scmp.eq.s32.totalorder %s11, 3
    %p101 = por %p99, %p100
    %p102 = scmp.ne.s32.totalorder %s94, %s97
    %p103 = scmp.eq.s32.totalorder %s11, 0
    %p104 = por %p102, %p103
    %p105 = scmp.ne.s32.totalorder %s94, %s97
    %p106 = scmp.eq.s32.totalorder %s16, 3
    %p107 = por %p105, %p106
    %p108 = scmp.ne.s32.totalorder %s97, %s98
    %p109 = scmp.eq.s32.totalorder %s16, 0
    %p110 = por %p108, %p109
    %p111 = scmp.ne.s32.totalorder %s97, %s98
    %p112 = scmp.eq.s32.totalorder %s17, 3
    %p113 = por %p111, %p112
    %p115 = scmp.ne.s32.totalorder %s98, %s114
    %p116 = scmp.eq.s32.totalorder %s17, 0
    %p117 = por %p115, %p116
    %s118 = ssub.s32 %s11, %s18
    %p119 = scmp.eq.s32.totalorder %s118, 0
    %s121 = sadd.s32 %s120, 1
    %s122 = scalar_select %p119, %s120, %s121
    %p125 = pneg %p119
    %p126 = scmp.eq.s32.totalorder %s11, 3
    %p127 = por %p125, %p126
    %p128 = scmp.ne.s32.totalorder %s120, %s123
    %p129 = scmp.eq.s32.totalorder %s11, 0
    %p130 = por %p128, %p129
    %p131 = scmp.ne.s32.totalorder %s120, %s123
    %p132 = scmp.eq.s32.totalorder %s16, 3
    %p133 = por %p131, %p132
    %p134 = scmp.ne.s32.totalorder %s123, %s124
    %p135 = scmp.eq.s32.totalorder %s16, 0
    %p136 = por %p134, %p135
    %p137 = scmp.ne.s32.totalorder %s123, %s124
    %p138 = scmp.eq.s32.totalorder %s17, 3
    %p139 = por %p137, %p138
    %p141 = scmp.ne.s32.totalorder %s124, %s140
    %p142 = scmp.eq.s32.totalorder %s17, 0
    %p143 = por %p141, %p142
    %p144 = scmp.le.s32.totalorder 1, %s11
    %p145 = scmp.lt.s32.totalorder %s11, 5
    %p146 = pnand %p144, %p145
    %p147 = pneg %p146
    // Predicated region
    $region9: #{prediction_mlp_forward.2} parent=5 // pred_check
      _
    $region10: #{prediction_mlp_forward.2} parent=5 // pred_check_branch
      %149 = sbr.rel (%p146) target = $region12
    $region11: #{prediction_mlp_forward.2} parent=5 // pred_region
      %s150 = ssub.s32 %s11, 1
      // Predicated region
      $region13: #{prediction_mlp_forward.2} parent=11 // pred_check
        %p151 = pneg %p58
      $region14: #{prediction_mlp_forward.2} parent=11 // pred_check_branch
        %153 = sbr.rel (%p151) target = $region16
      $region15: #{prediction_mlp_forward.2} parent=11 // pred_region
        _
      $region16: #{prediction_mlp_forward.2} parent=11 // pred_fallthru
        _
    $region12: #{prediction_mlp_forward.2} parent=5 // pred_fallthru
      _
    %p154 = scmp.lt.s32.totalorder %s11, 4
    // Predicated region
    $region17: #{prediction_mlp_forward.2} parent=5 // pred_check
      %p155 = pneg %p154
    $region18: #{prediction_mlp_forward.2} parent=5 // pred_check_branch
      %157 = sbr.rel (%p155) target = $region20
    $region19: #{prediction_mlp_forward.2} parent=5 // pred_region
      // Predicated region
      $region21: #{prediction_mlp_forward.2} parent=19 // pred_check
        %p158 = pneg %p31
      $region22: #{prediction_mlp_forward.2} parent=19 // pred_check_branch
        %160 = sbr.rel (%p158) target = $region24
      $region23: #{prediction_mlp_forward.2} parent=19 // pred_region
        %p161 = scmp.lt.s32.totalorder %s11, 3
        %s162 = scalar_select %p161, %s11, 3
        %s163 = smul.addr %s162, 8
        %s164 = scalar_lea.vmem %s0, %s163
      $region24: #{prediction_mlp_forward.2} parent=19 // pred_fallthru
        _
    $region20: #{prediction_mlp_forward.2} parent=5 // pred_fallthru
      _
    %p165 = scmp.le.s32.totalorder 1, %s11
    %p166 = scmp.lt.s32.totalorder %s11, 5
    %p167 = pnand %p165, %p166
    %p168 = pneg %p167
    // Predicated region
    $region25: #{prediction_mlp_forward.2} parent=5 // pred_check
      _
    $region26: #{prediction_mlp_forward.2} parent=5 // pred_check_branch
      %170 = sbr.rel (%p167) target = $region28
    $region27: #{prediction_mlp_forward.2} parent=5 // pred_region
      %s171 = ssub.s32 %s11, 1
      %p172 = scmp.lt.s32.totalorder %s16, 3
      %s173 = scalar_select %p172, %s16, 3
      %s174 = smul.addr %s173, 8
      %s175 = scalar_lea.vmem %s0, %s174
      %p176 = pneg %p37
      %p177 = pneg %p34
      %p178 = pneg %p58
      %p179 = pneg %p55
      %p180 = pneg %p84
      %p181 = pneg %p81
      %p182 = scmp.lt.s32.totalorder %s16, 3
      %s183 = scalar_select %p182, %s16, 3
      %s184 = smul.addr %s183, 4
      %s185 = scalar_lea.vmem %s2, %s184
      %p186 = pneg %p110
      %p187 = pneg %p107
      %p188 = scmp.lt.s32.totalorder %s16, 3
      %s189 = scalar_select %p188, %s16, 3
      %s190 = scalar_lea.vmem %s3, %s189
      %p191 = pneg %p136
      %p192 = pneg %p133
      %p193 = scmp.lt.s32.totalorder %s16, 3
      %s194 = scalar_select %p193, %s16, 3
      %s195 = scalar_lea.vmem %s4, %s194
      %p196 = scmp.lt.s32.totalorder %s16, 3
      %s197 = scalar_select %p196, %s16, 3
      %s198 = smul.addr %s197, 8
      %s199 = scalar_lea.vmem %s0, %s198
      %p200 = scmp.lt.s32.totalorder %s16, 3
      %s201 = scalar_select %p200, %s16, 3
      %s202 = smul.addr %s201, 4
      %s203 = scalar_lea.vmem %s2, %s202
      %p204 = scmp.lt.s32.totalorder %s16, 3
      %s205 = scalar_select %p204, %s16, 3
      %s206 = scalar_lea.vmem %s3, %s205
      %p207 = scmp.lt.s32.totalorder %s16, 3
      %s208 = scalar_select %p207, %s16, 3
      %s209 = scalar_lea.vmem %s4, %s208
      %v211 = vld [vmem:[%s199] sm:$0xff]
      %v212 = vpack.c.bf16 %v211, %v211
      %v213 = vld [vmem:[%s1] sm:$0xf]
      %v214 = vld [vmem:[%s1 + $0x4] sm:$0xf]
      %v215 = vld [vmem:[%s1 + $0x8] sm:$0xf]
      %v216 = vld [vmem:[%s1 + $0xc] sm:$0xf]
      %v217 = vld [vmem:[%s1 + $0x10] sm:$0xf]
      %v218 = vld [vmem:[%s1 + $0x14] sm:$0xf]
      %v219 = vld [vmem:[%s1 + $0x18] sm:$0xf]
      %v220 = vld [vmem:[%s1 + $0x1c] sm:$0xf]
      %v229 = vunpack.c.l.b16 %v213
      %v230 = vunpack.c.l.b16 %v214
      %v231 = vunpack.c.l.b16 %v215
      %v232 = vunpack.c.l.b16 %v216
      %v233 = vunpack.c.l.b16 %v217
      %v234 = vunpack.c.l.b16 %v218
      %v235 = vunpack.c.l.b16 %v219
      %v236 = vunpack.c.l.b16 %v220
      %v237 = vpack.c.b16 %v230, %v229
      %v238 = vpack.c.b16 %v232, %v231
      %v239 = vpack.c.b16 %v234, %v233
      %v240 = vpack.c.b16 %v236, %v235
      %vm245 = vcmask 523264
      %v247 = vsel %vm245, %v212, 0
      %249 = vmatprep.subr.bf16.mxu0 0
      %250 = vmatpush1.bf16.msra.mxu0 %v237
      %251 = vmatprep.subr.bf16.mxu0 0
      %252 = vmatpush1.bf16.msra.mxu0 %v238
      %253 = vmatprep.subr.bf16.mxu0 0
      %254 = vmatpush1.bf16.msra.mxu0 %v239
      %255 = vmatprep.subr.bf16.mxu0 0
      %256 = vmatpush1.bf16.msra.mxu0 %v240
      %257 = vmatprep.subr.bf16.mxu0 0
      %258 = vmatpush1.bf16.msra.mxu0 0
      %259 = vmatprep.subr.bf16.mxu0 0
      %260 = vmatpush1.bf16.msra.mxu0 0
      %261 = vmatprep.subr.bf16.mxu0 0
      %262 = vmatpush1.bf16.msra.mxu0 0
      %263 = vmatprep.subr.bf16.mxu0 0
      %264 = vmatpush1.bf16.msra.mxu0 0
      %265 = vmatprep.subr.bf16.mxu0 0
      %266 = vmatpush1.bf16.msra.mxu0 0
      %267 = vmatprep.subr.bf16.mxu0 0
      %268 = vmatpush1.bf16.msra.mxu0 0
      %269 = vmatprep.subr.bf16.mxu0 0
      %270 = vmatpush1.bf16.msra.mxu0 0
      %271 = vmatprep.subr.bf16.mxu0 0
      %272 = vmatpush1.bf16.msra.mxu0 0
      %273 = vmatprep.subr.bf16.mxu0 0
      %274 = vmatpush1.bf16.msra.mxu0 0
      %275 = vmatprep.subr.bf16.mxu0 0
      %276 = vmatpush1.bf16.msra.mxu0 0
      %277 = vmatprep.subr.bf16.mxu0 0
      %278 = vmatpush1.bf16.msra.mxu0 0
      %279 = vmatprep.subr.bf16.mxu0 0
      %280 = vmatpush1.bf16.msra.mxu0 0
      %281 = vmatprep.mubr.bf16.mxu0 0
      %282 = vmatmul.mubr.bf16.gmra.mrb[0].mxu0 %v247
      %v283 = vpop.f32.mrb[0].mxu0
      %v284 = vadd.f32 0.0, %v283
      %v285 = vpop.f32.mrb[0].mxu0
      %v286 = vpop.f32.mrb[0].mxu0
      %v287 = vpop.f32.mrb[0].mxu0
      %288 = vdwg.mxu0
      %vm289 = vcmask 261120
      %v290 = vsel %vm289, %v284, 0.0
      %v291 = vrot.slane %v290, 4
      %v292 = vadd.f32 %v290, %v291
      %v293 = vrot.slane %v292, 2
      %v294 = vadd.f32 %v292, %v293
      %v295 = vrot.slane %v294, 1
      %v296 = vadd.f32 %v294, %v295
      %vm297 = vcmask 253952
      %298 = vst.msk [vmem:[%s206] sm:$0x1] %vm297, %v296
      %v299 = vmul.f32 %v284, %v284
      %v300 = vsel %vm289, %v299, 0.0
      %v301 = vrot.slane %v300, 4
      %v302 = vadd.f32 %v300, %v301
      %v303 = vrot.slane %v302, 2
      %v304 = vadd.f32 %v302, %v303
      %v305 = vrot.slane %v304, 1
      %v306 = vadd.f32 %v304, %v305
      %307 = vst.msk [vmem:[%s209] sm:$0x1] %vm297, %v306
      %v308 = vpack.c.bf16 %v284, %v284
      %vm309 = vcmask 257024
      %310 = vst.msk [vmem:[%s203] sm:$0xf] %vm309, %v308
      %p311 = scmp.lt.s32.totalorder %s16, 3
      %s312 = scalar_select %p311, %s16, 3
      %s313 = smul.addr %s312, 4
      %s314 = scalar_lea.vmem %s2, %s313
      %p315 = scmp.lt.s32.totalorder %s16, 3
      %s316 = scalar_select %p315, %s16, 3
      %s317 = scalar_lea.vmem %s3, %s316
      %p318 = scmp.lt.s32.totalorder %s16, 3
      %s319 = scalar_select %p318, %s16, 3
      %s320 = scalar_lea.vmem %s4, %s319
      // Predicated region
      $region29: #{prediction_mlp_forward.2} parent=27 // pred_check
        %p321 = pneg %p81
      $region30: #{prediction_mlp_forward.2} parent=27 // pred_check_branch
        %323 = sbr.rel (%p321) target = $region32
      $region31: #{prediction_mlp_forward.2} parent=27 // pred_region
        _
      $region32: #{prediction_mlp_forward.2} parent=27 // pred_fallthru
        _
      // Predicated region
      $region33: #{prediction_mlp_forward.2} parent=27 // pred_check
        %p324 = pneg %p107
      $region34: #{prediction_mlp_forward.2} parent=27 // pred_check_branch
        %326 = sbr.rel (%p324) target = $region36
      $region35: #{prediction_mlp_forward.2} parent=27 // pred_region
        _
      $region36: #{prediction_mlp_forward.2} parent=27 // pred_fallthru
        _
      // Predicated region
      $region37: #{prediction_mlp_forward.2} parent=27 // pred_check
        %p327 = pneg %p133
      $region38: #{prediction_mlp_forward.2} parent=27 // pred_check_branch
        %329 = sbr.rel (%p327) target = $region40
      $region39: #{prediction_mlp_forward.2} parent=27 // pred_region
        _
      $region40: #{prediction_mlp_forward.2} parent=27 // pred_fallthru
        _
    $region28: #{prediction_mlp_forward.2} parent=5 // pred_fallthru
      _
    %p330 = scmp.le.s32.totalorder 2, %s11
    // Predicated region
    $region41: #{prediction_mlp_forward.2} parent=5 // pred_check
      %p331 = pneg %p330
    $region42: #{prediction_mlp_forward.2} parent=5 // pred_check_branch
      %333 = sbr.rel (%p331) target = $region44
    $region43: #{prediction_mlp_forward.2} parent=5 // pred_region
      %s334 = ssub.s32 %s11, 2
      // Predicated region
      $region45: #{prediction_mlp_forward.2} parent=43 // pred_check
        %p335 = pneg %p87
      $region46: #{prediction_mlp_forward.2} parent=43 // pred_check_branch
        %337 = sbr.rel (%p335) target = $region48
      $region47: #{prediction_mlp_forward.2} parent=43 // pred_region
        %p338 = scmp.lt.s32.totalorder %s17, 3
        %s339 = scalar_select %p338, %s17, 3
        %s340 = smul.addr %s339, 4
        %s341 = scalar_lea.vmem %s2, %s340
      $region48: #{prediction_mlp_forward.2} parent=43 // pred_fallthru
        _
      // Predicated region
      $region49: #{prediction_mlp_forward.2} parent=43 // pred_check
        %p342 = pneg %p113
      $region50: #{prediction_mlp_forward.2} parent=43 // pred_check_branch
        %344 = sbr.rel (%p342) target = $region52
      $region51: #{prediction_mlp_forward.2} parent=43 // pred_region
        %p345 = scmp.lt.s32.totalorder %s17, 3
        %s346 = scalar_select %p345, %s17, 3
        %s347 = scalar_lea.vmem %s3, %s346
      $region52: #{prediction_mlp_forward.2} parent=43 // pred_fallthru
        _
      // Predicated region
      $region53: #{prediction_mlp_forward.2} parent=43 // pred_check
        %p348 = pneg %p139
      $region54: #{prediction_mlp_forward.2} parent=43 // pred_check_branch
        %350 = sbr.rel (%p348) target = $region56
      $region55: #{prediction_mlp_forward.2} parent=43 // pred_region
        %p351 = scmp.lt.s32.totalorder %s17, 3
        %s352 = scalar_select %p351, %s17, 3
        %s353 = scalar_lea.vmem %s4, %s352
      $region56: #{prediction_mlp_forward.2} parent=43 // pred_fallthru
        _
    $region44: #{prediction_mlp_forward.2} parent=5 // pred_fallthru
      _
  $region6: #{prediction_mlp_forward.2} parent=0 // loop_footer
    %s15 = sadd.s32 1, %s11
  $region7: #{prediction_mlp_forward.2} parent=0 // loop_footer_branch
    %10 = sbr.rel target = $region3
  $region8: #{prediction_mlp_forward.2} parent=0 // loop_exit
    _

</llo_original>
